<compile_context>
chip_gen: v7x
topology: tpu7x:2x2x1
jax: 0.10.0
libtpu: 0.0.40
codegen_flags: <defaults>
</compile_context>

<pallas_src>
import functools
import numpy as np
import jax
import jax.numpy as jnp
from jax import lax
from jax.experimental import pallas as pl
from jax.experimental.pallas import tpu as pltpu

ATTEN_SIZE = 2
HIDDEN_SIZE = 128
INTER_SIZE = 32
OUTPUT_SIZE = 2
NUM_NEI = 2 * ATTEN_SIZE + 1      # 5
PACK_W = 128                       # lane-dense packed-output width
ATTN_LANE0 = 0                     # packed lanes [0, 5)  : attention weights
OUT_LANE0 = NUM_NEI                # packed lanes [5, 7)  : output head


def _atten_kernel(x_ref, pe_ref, w1_ref, b1_ref, wqkv_ref, bv_ref,
                  w2_ref, b2_ref, w3p_ref, b3p_ref, packed_ref, *, seq_len):
    R = x_ref.shape[0]             # rows in this tile (= Bt * seq_len)
    H = HIDDEN_SIZE
    P = ATTEN_SIZE
    S = seq_len

    # ---- layer1 + ReLU + positional encoding (bf16 MXU, f32 accumulate) ----
    h = jnp.dot(x_ref[...], w1_ref[...], preferred_element_type=jnp.float32)
    h = jnp.maximum(h + b1_ref[...], 0.0) + pe_ref[...]           # (R, H) f32

    # ---- fused QKV: one (R,128)x(128,384) MXU pass, free 128-lane slices ----
    hb = h.astype(jnp.bfloat16)
    qkv = jnp.dot(hb, wqkv_ref[...], preferred_element_type=jnp.float32)
    inv_sqrt_h = 1.0 / float(np.sqrt(float(H)))
    q = qkv[:, 0:H] * inv_sqrt_h          # fold 1/sqrt(H) into q once
    k = qkv[:, H:2 * H]
    v = qkv[:, 2 * H:3 * H]               # bias b_v added later (once)

    # within-sequence position of each tile row (tiles start at seq boundaries)
    s = lax.broadcasted_iota(jnp.int32, (R, 1), 0) % S

    # ---- window-5 neighbourhood via XLU rolls + (R,1) validity masks ----
    # neighbour column j corresponds to torch roll k = j - P, i.e. row t + (P-j)
    score_cols = []
    v_rolled = []
    valids = []
    for j in range(NUM_NEI):
        d = P - j                          # neighbour offset: +2,+1,0,-1,-2
        if d == 0:
            kj, vj = k, v
            valid = None
        else:
            kj = pltpu.roll(k, shift=(-d) % R, axis=0)    # kj[r] = k[(r+d)%R]
            vj = pltpu.roll(v, shift=(-d) % R, axis=0)
            valid = (s < (S - d)) if d > 0 else (s >= (-d))
        sc = jnp.sum(q * kj, axis=-1, keepdims=True)      # (R, 1)
        if valid is not None:
            sc = jnp.where(valid, sc, 0.0)   # padded key -> score 0 (as torch)
        score_cols.append(sc)
        v_rolled.append(vj)
        valids.append(valid)

    # ---- softmax over the 5 neighbour columns ----
    m = score_cols[0]
    for sc in score_cols[1:]:
        m = jnp.maximum(m, sc)
    e_cols = [jnp.exp(sc - m) for sc in score_cols]
    denom = e_cols[0]
    for e in e_cols[1:]:
        denom = denom + e
    inv_denom = pl.reciprocal(denom, approx=True)
    w_cols = [e * inv_denom for e in e_cols]

    # ---- context = sum_j attn_j * vals_j ----
    # Padded neighbours have vals == b_v; since sum_j attn_j == 1 we zero the
    # invalid weights for the value sum and add b_v once at the end.
    ctx = jnp.zeros((R, H), dtype=jnp.float32)
    for j in range(NUM_NEI):
        wj = w_cols[j]
        if valids[j] is not None:
            wj = jnp.where(valids[j], wj, 0.0)
        ctx = ctx + wj * v_rolled[j]
    ctx = ctx + bv_ref[...]

    # ---- output head: layer3(relu(layer2(ctx))), W3/b3 pre-padded to 128 lanes
    h2 = jnp.dot(ctx.astype(jnp.bfloat16), w2_ref[...],
                 preferred_element_type=jnp.float32) + b2_ref[...]
    h2 = jnp.maximum(h2, 0.0)
    out_wide = jnp.dot(h2.astype(jnp.bfloat16), w3p_ref[...],
                       preferred_element_type=jnp.float32) + b3p_ref[...]  # (R,128)

    # ---- pack attention weights into lanes [0,5); out already at lanes [5,7)
    lane = lax.broadcasted_iota(jnp.int32, (R, PACK_W), 1)
    packed = out_wide
    for j in range(NUM_NEI):
        packed = jnp.where(lane == ATTN_LANE0 + j, w_cols[j], packed)
    packed_ref[...] = packed.astype(packed_ref.dtype)


def _choose_batch_tile(batch, seq_len, target_rows=1024):
    """Largest divisor Bt of batch with Bt*seq_len <= target and a multiple of 8."""
    best = None
    for bt in range(1, batch + 1):
        if batch % bt:
            continue
        rows = bt * seq_len
        if rows % 8 != 0 or rows > target_rows:
            continue
        best = bt
    # Fallback: single step over the whole (flattened) batch -> block == full dim.
    return best if best is not None else batch


def ex_rest_self_atten_forward(x, params, pe):
    """x: (B, S, D_in) f32 -> (output (B,S,2), atten_weights (B,S,1,5))."""
    w1, b1, wq, wk, wv, bv, w2, b2, w3, b3 = params
    B, S, D_in = x.shape
    H = HIDDEN_SIZE
    assert S <= pe.shape[0], "positional encoding max_len exceeded"

    Bt = _choose_batch_tile(B, S)
    num_steps = B // Bt
    R = Bt * S                                      # rows per grid step

    # one-time operand packing (outside the kernel)
    x_flat = x.reshape(B * S, D_in).astype(jnp.bfloat16)
    pe_tile = jnp.tile(pe[:S], (Bt, 1)).astype(jnp.float32)           # (R, H)
    wqkv = jnp.concatenate([wq, wk, wv], axis=1).astype(jnp.bfloat16)  # (H, 3H)
    w1b = w1.astype(jnp.bfloat16)
    w2b = w2.astype(jnp.bfloat16)
    w3p = jnp.zeros((INTER_SIZE, PACK_W), jnp.float32)
    w3p = w3p.at[:, OUT_LANE0:OUT_LANE0 + OUTPUT_SIZE].set(w3).astype(jnp.bfloat16)
    b3p = jnp.zeros((1, PACK_W), jnp.float32)
    b3p = b3p.at[:, OUT_LANE0:OUT_LANE0 + OUTPUT_SIZE].set(b3)

    flops = B * S * (2 * D_in * H                       # layer1
                     + 2 * H * 3 * H                    # fused QKV
                     + 2 * NUM_NEI * 2 * H              # scores + context
                     + 2 * H * INTER_SIZE               # layer2
                     + 2 * INTER_SIZE * PACK_W)         # padded layer3
    bytes_accessed = (2 * x_flat.size
                      + 2 * (w1b.size + wqkv.size + w2b.size + w3p.size)
                      + 4 * (pe_tile.size + b1.size + bv.size + b2.size + b3p.size)
                      + 4 * B * S * PACK_W)
    cost = pl.CostEstimate(flops=int(flops),
                           transcendentals=int(B * S * (NUM_NEI + 1)),
                           bytes_accessed=int(bytes_accessed))

    const = lambda i: (0, 0)     # weights / biases / PE: DMA'd once, VMEM-resident

    packed = pl.pallas_call(
        functools.partial(_atten_kernel, seq_len=S),
        out_shape=jax.ShapeDtypeStruct((B * S, PACK_W), jnp.float32),
        grid_spec=pltpu.PrefetchScalarGridSpec(
            num_scalar_prefetch=0,
            grid=(num_steps,),
            in_specs=[
                pl.BlockSpec((R, D_in), lambda i: (i, 0)),       # x rows (Bt seqs)
                pl.BlockSpec((R, H), const),                     # PE tiled to R rows
                pl.BlockSpec((D_in, H), const),                  # W1 (bf16)
                pl.BlockSpec((1, H), const),                     # b1
                pl.BlockSpec((H, 3 * H), const),                 # Wq|Wk|Wv (bf16)
                pl.BlockSpec((1, H), const),                     # bv
                pl.BlockSpec((H, INTER_SIZE), const),            # W2 (bf16)
                pl.BlockSpec((1, INTER_SIZE), const),            # b2
                pl.BlockSpec((INTER_SIZE, PACK_W), const),       # W3 padded (bf16)
                pl.BlockSpec((1, PACK_W), const),                # b3 padded
            ],
            out_specs=pl.BlockSpec((R, PACK_W), lambda i: (i, 0)),
        ),
        compiler_params=pltpu.CompilerParams(
            dimension_semantics=("parallel",)),      # shard batch steps across TCs
        cost_estimate=cost,
    )(x_flat, pe_tile, w1b, b1, wqkv, bv, w2b, b2, w3p, b3p)

    packed = packed.reshape(B, S, PACK_W)
    out = packed[:, :, OUT_LANE0:OUT_LANE0 + OUTPUT_SIZE]
    attn = packed[:, :, ATTN_LANE0:ATTN_LANE0 + NUM_NEI].reshape(B, S, 1, NUM_NEI)
    return out, attn


def create_positional_encoding(hidden_size, max_len=100):
    position = np.arange(max_len, dtype=np.float32)[:, None]
    div_term = np.exp(np.arange(0, hidden_size, 2, dtype=np.float32)
                      * (-np.log(10000.0) / hidden_size))
    angles = position * div_term
    pe = np.zeros((max_len, hidden_size), dtype=np.float32)
    pe[:, 0::2] = np.sin(angles)
    pe[:, 1::2] = np.cos(angles)
    return jnp.asarray(pe)


def xavier_normal(key, fan_in, fan_out):
    std = (2.0 / (fan_in + fan_out)) ** 0.5
    return std * jax.random.normal(key, (fan_in, fan_out), dtype=jnp.float32)


def init_params(key, input_size):
    # The torch module inits biases to zero; small random biases are used here
    # purely so the correctness check exercises every bias/broadcast path.
    keys = jax.random.split(key, 10)
    w1 = xavier_normal(keys[0], input_size, HIDDEN_SIZE)
    b1 = 0.1 * jax.random.normal(keys[1], (1, HIDDEN_SIZE), dtype=jnp.float32)
    wq = xavier_normal(keys[2], HIDDEN_SIZE, HIDDEN_SIZE)
    wk = xavier_normal(keys[3], HIDDEN_SIZE, HIDDEN_SIZE)
    wv = xavier_normal(keys[4], HIDDEN_SIZE, HIDDEN_SIZE)
    bv = 0.1 * jax.random.normal(keys[5], (1, HIDDEN_SIZE), dtype=jnp.float32)
    w2 = xavier_normal(keys[6], HIDDEN_SIZE, INTER_SIZE)
    b2 = 0.1 * jax.random.normal(keys[7], (1, INTER_SIZE), dtype=jnp.float32)
    w3 = xavier_normal(keys[8], INTER_SIZE, OUTPUT_SIZE)
    b3 = 0.1 * jax.random.normal(keys[9], (1, OUTPUT_SIZE), dtype=jnp.float32)
    return (w1, b1, wq, wk, wv, bv, w2, b2, w3, b3)


def reference_forward(x, params, pe):
    """Pure-JAX re-implementation of the torch forward, mirroring the kernel's
    mixed precision (bf16 matmul inputs, f32 accumulation) so the correctness
    check isolates kernel logic from quantization noise."""
    w1, b1, wq, wk, wv, bv, w2, b2, w3, b3 = params
    B, S, _ = x.shape
    f32, bf = jnp.float32, jnp.bfloat16
    h = jnp.dot(x.astype(bf), w1.astype(bf), preferred_element_type=f32) + b1[None]
    h = jnp.maximum(h, 0.0) + pe[None, :S]
    hb = h.astype(bf)
    padded = jnp.pad(hb, ((0, 0), (ATTEN_SIZE, ATTEN_SIZE), (0, 0)))
    x_nei = jnp.stack(
        [jnp.roll(padded, k, axis=1) for k in range(-ATTEN_SIZE, ATTEN_SIZE + 1)],
        axis=2)[:, ATTEN_SIZE:-ATTEN_SIZE]                            # (B,S,5,H)
    query = jnp.dot(hb, wq.astype(bf), preferred_element_type=f32)[:, :, None, :]
    keys = jnp.dot(x_nei, wk.astype(bf), preferred_element_type=f32)
    vals = jnp.dot(x_nei, wv.astype(bf), preferred_element_type=f32) + bv[None, None]
    scores = jnp.sum(query * keys, axis=-1) / np.sqrt(float(HIDDEN_SIZE))  # (B,S,5)
    attn = jax.nn.softmax(scores, axis=-1)[:, :, None, :]             # (B,S,1,5)
    ctx = jnp.sum(attn[:, :, 0, :, None] * vals, axis=2)              # (B,S,H)
    h2 = jnp.maximum(
        jnp.dot(ctx.astype(bf), w2.astype(bf), preferred_element_type=f32) + b2[None],
        0.0)
    out = jnp.dot(h2.astype(bf), w3.astype(bf), preferred_element_type=f32) + b3[None]
    return out, attn


if __name__ == "__main__":
    key = jax.random.PRNGKey(0)
    kx, kparam = jax.random.split(key)

    B, S, input_size = 2, 8, 64   # small shapes consistent with (B, S, D_in) input
    x = jax.random.normal(kx, (B, S, input_size), dtype=jnp.float32)
    params = init_params(kparam, input_size)
    pe = create_positional_encoding(HIDDEN_SIZE, max_len=100)

    out, attn = ex_rest_self_atten_forward(x, params, pe)
    out = jax.block_until_ready(out)
    attn = jax.block_until_ready(attn)

    ref_out, ref_attn = reference_forward(x, params, pe)

    assert out.shape == (B, S, OUTPUT_SIZE)
    assert attn.shape == (B, S, 1, NUM_NEI)
    # Tolerance covers the approx-reciprocal softmax + bf16 accumulation-order deltas.
    assert jnp.allclose(out, ref_out, atol=2e-2, rtol=2e-2), \
        float(jnp.max(jnp.abs(out - ref_out)))
    assert jnp.allclose(attn, ref_attn, atol=2e-2, rtol=2e-2), \
        float(jnp.max(jnp.abs(attn - ref_attn)))

    print("KERNEL_OK")
</pallas_src>

<mosaic_0001>
module attributes {stable_mosaic.version = 11 : i64} {
  func.func @_atten_kernel(%arg0: i32, %arg1: memref<16x64xbf16, #tpu.memory_space<vmem>>, %arg2: memref<16x128xf32, #tpu.memory_space<vmem>>, %arg3: memref<64x128xbf16, #tpu.memory_space<vmem>>, %arg4: memref<1x128xf32, #tpu.memory_space<vmem>>, %arg5: memref<128x384xbf16, #tpu.memory_space<vmem>>, %arg6: memref<1x128xf32, #tpu.memory_space<vmem>>, %arg7: memref<128x32xbf16, #tpu.memory_space<vmem>>, %arg8: memref<1x32xf32, #tpu.memory_space<vmem>>, %arg9: memref<32x128xbf16, #tpu.memory_space<vmem>>, %arg10: memref<1x128xf32, #tpu.memory_space<vmem>>, %arg11: memref<16x128xf32, #tpu.memory_space<vmem>>) attributes {dimension_semantics = [#tpu.dimension_semantics<parallel>], iteration_bounds = array<i64: 1>, scalar_prefetch = 0 : i64, scratch_operands = 0 : i64, tpu.core_type = #tpu.core_type<tc>, window_params = [{transform_indices = @transform_0, window_bounds = array<i64: 16, 64>}, {pipeline_mode = #tpu.pipeline_mode<synchronous>, transform_indices = @transform_1, window_bounds = array<i64: 16, 128>}, {pipeline_mode = #tpu.pipeline_mode<synchronous>, transform_indices = @transform_2, window_bounds = array<i64: 64, 128>}, {pipeline_mode = #tpu.pipeline_mode<synchronous>, transform_indices = @transform_3, window_bounds = array<i64: 1, 128>}, {pipeline_mode = #tpu.pipeline_mode<synchronous>, transform_indices = @transform_4, window_bounds = array<i64: 128, 384>}, {pipeline_mode = #tpu.pipeline_mode<synchronous>, transform_indices = @transform_5, window_bounds = array<i64: 1, 128>}, {pipeline_mode = #tpu.pipeline_mode<synchronous>, transform_indices = @transform_6, window_bounds = array<i64: 128, 32>}, {pipeline_mode = #tpu.pipeline_mode<synchronous>, transform_indices = @transform_7, window_bounds = array<i64: 1, 32>}, {pipeline_mode = #tpu.pipeline_mode<synchronous>, transform_indices = @transform_8, window_bounds = array<i64: 32, 128>}, {pipeline_mode = #tpu.pipeline_mode<synchronous>, transform_indices = @transform_9, window_bounds = array<i64: 1, 128>}, {transform_indices = @transform_10, window_bounds = array<i64: 16, 128>}]} {
    %c0 = arith.constant 0 : index
    %c0_0 = arith.constant 0 : index
    %0 = vector.load %arg1[%c0, %c0_0] : memref<16x64xbf16, #tpu.memory_space<vmem>>, vector<16x64xbf16>
    %c0_1 = arith.constant 0 : index
    %c0_2 = arith.constant 0 : index
    %1 = vector.load %arg3[%c0_1, %c0_2] : memref<64x128xbf16, #tpu.memory_space<vmem>>, vector<64x128xbf16>
    %cst = arith.constant dense<0.000000e+00> : vector<16x128xf32>
    %2 = tpu.matmul %0, %1, %cst {dimension_numbers = #tpu.dot_dimension_numbers<[1], [0], [0], [1], [0, 0, 1, 1], [], []>} : vector<16x64xbf16>, vector<64x128xbf16>, vector<16x128xf32> -> vector<16x128xf32>
    %c0_3 = arith.constant 0 : index
    %c0_4 = arith.constant 0 : index
    %3 = vector.load %arg4[%c0_3, %c0_4] : memref<1x128xf32, #tpu.memory_space<vmem>>, vector<1x128xf32>
    %4 = vector.broadcast %3 : vector<1x128xf32> to vector<16x128xf32>
    %5 = arith.addf %2, %4 : vector<16x128xf32>
    %cst_5 = arith.constant 0.000000e+00 : f32
    %6 = vector.broadcast %cst_5 : f32 to vector<16x128xf32>
    %7 = arith.maximumf %5, %6 : vector<16x128xf32>
    %c0_6 = arith.constant 0 : index
    %c0_7 = arith.constant 0 : index
    %8 = vector.load %arg2[%c0_6, %c0_7] : memref<16x128xf32, #tpu.memory_space<vmem>>, vector<16x128xf32>
    %9 = arith.addf %7, %8 : vector<16x128xf32>
    %10 = arith.truncf %9 : vector<16x128xf32> to vector<16x128xbf16>
    %c0_8 = arith.constant 0 : index
    %c0_9 = arith.constant 0 : index
    %11 = vector.load %arg5[%c0_8, %c0_9] : memref<128x384xbf16, #tpu.memory_space<vmem>>, vector<128x384xbf16>
    %cst_10 = arith.constant dense<0.000000e+00> : vector<16x384xf32>
    %12 = tpu.matmul %10, %11, %cst_10 {dimension_numbers = #tpu.dot_dimension_numbers<[1], [0], [0], [1], [0, 0, 1, 1], [], []>} : vector<16x128xbf16>, vector<128x384xbf16>, vector<16x384xf32> -> vector<16x384xf32>
    %13 = vector.extract_strided_slice %12 {offsets = [0, 0], sizes = [16, 128], strides = [1, 1]} : vector<16x384xf32> to vector<16x128xf32>
    %cst_11 = arith.constant 0.0883883461 : f32
    %14 = vector.broadcast %cst_11 : f32 to vector<16x128xf32>
    %15 = arith.mulf %13, %14 : vector<16x128xf32>
    %16 = vector.extract_strided_slice %12 {offsets = [0, 128], sizes = [16, 128], strides = [1, 1]} : vector<16x384xf32> to vector<16x128xf32>
    %17 = vector.extract_strided_slice %12 {offsets = [0, 256], sizes = [16, 128], strides = [1, 1]} : vector<16x384xf32> to vector<16x128xf32>
    %18 = tpu.iota {dimensions = array<i32: 0>} : vector<16x1xi32>
    %c8_i32 = arith.constant 8 : i32
    %c0_i32 = arith.constant 0 : i32
    %19 = arith.cmpi eq, %c8_i32, %c0_i32 : i32
    %c1_i32 = arith.constant 1 : i32
    %20 = arith.select %19, %c1_i32, %c8_i32 : i32
    %21 = vector.broadcast %20 : i32 to vector<16x1xi32>
    %22 = arith.remsi %18, %21 : vector<16x1xi32>
    %c0_i32_12 = arith.constant 0 : i32
    %23 = vector.broadcast %c0_i32_12 : i32 to vector<16x1xi32>
    %24 = arith.cmpi ne, %22, %23 : vector<16x1xi32>
    %c0_i32_13 = arith.constant 0 : i32
    %25 = vector.broadcast %c0_i32_13 : i32 to vector<16x1xi32>
    %26 = arith.cmpi slt, %22, %25 : vector<16x1xi32>
    %c0_i32_14 = arith.constant 0 : i32
    %27 = arith.cmpi slt, %20, %c0_i32_14 : i32
    %28 = vector.broadcast %27 : i1 to vector<16x1xi1>
    %29 = vector.broadcast %28 : vector<16x1xi1> to vector<16x1xi1>
    %30 = arith.xori %26, %29 : vector<16x1xi1>
    %31 = arith.andi %30, %24 : vector<16x1xi1>
    %32 = vector.broadcast %20 : i32 to vector<16x1xi32>
    %33 = arith.addi %22, %32 : vector<16x1xi32>
    %34 = arith.select %31, %33, %22 : vector<16x1xi1>, vector<16x1xi32>
    %c14_i32 = arith.constant 14 : i32
    %35 = tpu.dynamic_rotate %16 by %c14_i32 dim 0 : vector<16x128xf32>, i32 -> vector<16x128xf32>
    %c14_i32_15 = arith.constant 14 : i32
    %36 = tpu.dynamic_rotate %17 by %c14_i32_15 dim 0 : vector<16x128xf32>, i32 -> vector<16x128xf32>
    %c6_i32 = arith.constant 6 : i32
    %37 = vector.broadcast %c6_i32 : i32 to vector<16x1xi32>
    %38 = arith.cmpi slt, %34, %37 : vector<16x1xi32>
    %39 = arith.mulf %15, %35 : vector<16x128xf32>
    %cst_16 = arith.constant dense<0.000000e+00> : vector<16xf32>
    %40 = vector.multi_reduction <add>, %39, %cst_16 [1] : vector<16x128xf32> to vector<16xf32>
    %41 = vector.shape_cast %40 : vector<16xf32> to vector<16x1xf32>
    %cst_17 = arith.constant 0.000000e+00 : f32
    %42 = vector.broadcast %cst_17 : f32 to vector<16x1xf32>
    %43 = arith.select %38, %41, %42 : vector<16x1xi1>, vector<16x1xf32>
    %c15_i32 = arith.constant 15 : i32
    %44 = tpu.dynamic_rotate %16 by %c15_i32 dim 0 : vector<16x128xf32>, i32 -> vector<16x128xf32>
    %c15_i32_18 = arith.constant 15 : i32
    %45 = tpu.dynamic_rotate %17 by %c15_i32_18 dim 0 : vector<16x128xf32>, i32 -> vector<16x128xf32>
    %c7_i32 = arith.constant 7 : i32
    %46 = vector.broadcast %c7_i32 : i32 to vector<16x1xi32>
    %47 = arith.cmpi slt, %34, %46 : vector<16x1xi32>
    %48 = arith.mulf %15, %44 : vector<16x128xf32>
    %cst_19 = arith.constant dense<0.000000e+00> : vector<16xf32>
    %49 = vector.multi_reduction <add>, %48, %cst_19 [1] : vector<16x128xf32> to vector<16xf32>
    %50 = vector.shape_cast %49 : vector<16xf32> to vector<16x1xf32>
    %cst_20 = arith.constant 0.000000e+00 : f32
    %51 = vector.broadcast %cst_20 : f32 to vector<16x1xf32>
    %52 = arith.select %47, %50, %51 : vector<16x1xi1>, vector<16x1xf32>
    %53 = arith.mulf %15, %16 : vector<16x128xf32>
    %cst_21 = arith.constant dense<0.000000e+00> : vector<16xf32>
    %54 = vector.multi_reduction <add>, %53, %cst_21 [1] : vector<16x128xf32> to vector<16xf32>
    %55 = vector.shape_cast %54 : vector<16xf32> to vector<16x1xf32>
    %c1_i32_22 = arith.constant 1 : i32
    %56 = tpu.dynamic_rotate %16 by %c1_i32_22 dim 0 : vector<16x128xf32>, i32 -> vector<16x128xf32>
    %c1_i32_23 = arith.constant 1 : i32
    %57 = tpu.dynamic_rotate %17 by %c1_i32_23 dim 0 : vector<16x128xf32>, i32 -> vector<16x128xf32>
    %c1_i32_24 = arith.constant 1 : i32
    %58 = vector.broadcast %c1_i32_24 : i32 to vector<16x1xi32>
    %59 = arith.cmpi sge, %34, %58 : vector<16x1xi32>
    %60 = arith.mulf %15, %56 : vector<16x128xf32>
    %cst_25 = arith.constant dense<0.000000e+00> : vector<16xf32>
    %61 = vector.multi_reduction <add>, %60, %cst_25 [1] : vector<16x128xf32> to vector<16xf32>
    %62 = vector.shape_cast %61 : vector<16xf32> to vector<16x1xf32>
    %cst_26 = arith.constant 0.000000e+00 : f32
    %63 = vector.broadcast %cst_26 : f32 to vector<16x1xf32>
    %64 = arith.select %59, %62, %63 : vector<16x1xi1>, vector<16x1xf32>
    %c2_i32 = arith.constant 2 : i32
    %65 = tpu.dynamic_rotate %16 by %c2_i32 dim 0 : vector<16x128xf32>, i32 -> vector<16x128xf32>
    %c2_i32_27 = arith.constant 2 : i32
    %66 = tpu.dynamic_rotate %17 by %c2_i32_27 dim 0 : vector<16x128xf32>, i32 -> vector<16x128xf32>
    %c2_i32_28 = arith.constant 2 : i32
    %67 = vector.broadcast %c2_i32_28 : i32 to vector<16x1xi32>
    %68 = arith.cmpi sge, %34, %67 : vector<16x1xi32>
    %69 = arith.mulf %15, %65 : vector<16x128xf32>
    %cst_29 = arith.constant dense<0.000000e+00> : vector<16xf32>
    %70 = vector.multi_reduction <add>, %69, %cst_29 [1] : vector<16x128xf32> to vector<16xf32>
    %71 = vector.shape_cast %70 : vector<16xf32> to vector<16x1xf32>
    %cst_30 = arith.constant 0.000000e+00 : f32
    %72 = vector.broadcast %cst_30 : f32 to vector<16x1xf32>
    %73 = arith.select %68, %71, %72 : vector<16x1xi1>, vector<16x1xf32>
    %74 = arith.maximumf %43, %52 : vector<16x1xf32>
    %75 = arith.maximumf %74, %55 : vector<16x1xf32>
    %76 = arith.maximumf %75, %64 : vector<16x1xf32>
    %77 = arith.maximumf %76, %73 : vector<16x1xf32>
    %78 = arith.subf %43, %77 : vector<16x1xf32>
    %79 = math.exp %78 : vector<16x1xf32>
    %80 = arith.subf %52, %77 : vector<16x1xf32>
    %81 = math.exp %80 : vector<16x1xf32>
    %82 = arith.subf %55, %77 : vector<16x1xf32>
    %83 = math.exp %82 : vector<16x1xf32>
    %84 = arith.subf %64, %77 : vector<16x1xf32>
    %85 = math.exp %84 : vector<16x1xf32>
    %86 = arith.subf %73, %77 : vector<16x1xf32>
    %87 = math.exp %86 : vector<16x1xf32>
    %88 = arith.addf %79, %81 : vector<16x1xf32>
    %89 = arith.addf %88, %83 : vector<16x1xf32>
    %90 = arith.addf %89, %85 : vector<16x1xf32>
    %91 = arith.addf %90, %87 : vector<16x1xf32>
    %92 = tpu.reciprocal %91 {approx = true} : vector<16x1xf32> -> vector<16x1xf32>
    %93 = arith.mulf %79, %92 : vector<16x1xf32>
    %94 = arith.mulf %81, %92 : vector<16x1xf32>
    %95 = arith.mulf %83, %92 : vector<16x1xf32>
    %96 = arith.mulf %85, %92 : vector<16x1xf32>
    %97 = arith.mulf %87, %92 : vector<16x1xf32>
    %cst_31 = arith.constant 0.000000e+00 : f32
    %98 = vector.broadcast %cst_31 : f32 to vector<16x128xf32>
    %cst_32 = arith.constant 0.000000e+00 : f32
    %99 = vector.broadcast %cst_32 : f32 to vector<16x1xf32>
    %100 = arith.select %38, %93, %99 : vector<16x1xi1>, vector<16x1xf32>
    %101 = vector.broadcast %100 : vector<16x1xf32> to vector<16x128xf32>
    %102 = arith.mulf %101, %36 : vector<16x128xf32>
    %103 = arith.addf %98, %102 : vector<16x128xf32>
    %cst_33 = arith.constant 0.000000e+00 : f32
    %104 = vector.broadcast %cst_33 : f32 to vector<16x1xf32>
    %105 = arith.select %47, %94, %104 : vector<16x1xi1>, vector<16x1xf32>
    %106 = vector.broadcast %105 : vector<16x1xf32> to vector<16x128xf32>
    %107 = arith.mulf %106, %45 : vector<16x128xf32>
    %108 = arith.addf %103, %107 : vector<16x128xf32>
    %109 = vector.broadcast %95 : vector<16x1xf32> to vector<16x128xf32>
    %110 = arith.mulf %109, %17 : vector<16x128xf32>
    %111 = arith.addf %108, %110 : vector<16x128xf32>
    %cst_34 = arith.constant 0.000000e+00 : f32
    %112 = vector.broadcast %cst_34 : f32 to vector<16x1xf32>
    %113 = arith.select %59, %96, %112 : vector<16x1xi1>, vector<16x1xf32>
    %114 = vector.broadcast %113 : vector<16x1xf32> to vector<16x128xf32>
    %115 = arith.mulf %114, %57 : vector<16x128xf32>
    %116 = arith.addf %111, %115 : vector<16x128xf32>
    %cst_35 = arith.constant 0.000000e+00 : f32
    %117 = vector.broadcast %cst_35 : f32 to vector<16x1xf32>
    %118 = arith.select %68, %97, %117 : vector<16x1xi1>, vector<16x1xf32>
    %119 = vector.broadcast %118 : vector<16x1xf32> to vector<16x128xf32>
    %120 = arith.mulf %119, %66 : vector<16x128xf32>
    %121 = arith.addf %116, %120 : vector<16x128xf32>
    %c0_36 = arith.constant 0 : index
    %c0_37 = arith.constant 0 : index
    %122 = vector.load %arg6[%c0_36, %c0_37] : memref<1x128xf32, #tpu.memory_space<vmem>>, vector<1x128xf32>
    %123 = vector.broadcast %122 : vector<1x128xf32> to vector<16x128xf32>
    %124 = arith.addf %121, %123 : vector<16x128xf32>
    %125 = arith.truncf %124 : vector<16x128xf32> to vector<16x128xbf16>
    %c0_38 = arith.constant 0 : index
    %c0_39 = arith.constant 0 : index
    %126 = vector.load %arg7[%c0_38, %c0_39] : memref<128x32xbf16, #tpu.memory_space<vmem>>, vector<128x32xbf16>
    %cst_40 = arith.constant dense<0.000000e+00> : vector<16x32xf32>
    %127 = tpu.matmul %125, %126, %cst_40 {dimension_numbers = #tpu.dot_dimension_numbers<[1], [0], [0], [1], [0, 0, 1, 1], [], []>} : vector<16x128xbf16>, vector<128x32xbf16>, vector<16x32xf32> -> vector<16x32xf32>
    %c0_41 = arith.constant 0 : index
    %c0_42 = arith.constant 0 : index
    %128 = vector.load %arg8[%c0_41, %c0_42] : memref<1x32xf32, #tpu.memory_space<vmem>>, vector<1x32xf32>
    %129 = vector.broadcast %128 : vector<1x32xf32> to vector<16x32xf32>
    %130 = arith.addf %127, %129 : vector<16x32xf32>
    %cst_43 = arith.constant 0.000000e+00 : f32
    %131 = vector.broadcast %cst_43 : f32 to vector<16x32xf32>
    %132 = arith.maximumf %130, %131 : vector<16x32xf32>
    %133 = arith.truncf %132 : vector<16x32xf32> to vector<16x32xbf16>
    %c0_44 = arith.constant 0 : index
    %c0_45 = arith.constant 0 : index
    %134 = vector.load %arg9[%c0_44, %c0_45] : memref<32x128xbf16, #tpu.memory_space<vmem>>, vector<32x128xbf16>
    %cst_46 = arith.constant dense<0.000000e+00> : vector<16x128xf32>
    %135 = tpu.matmul %133, %134, %cst_46 {dimension_numbers = #tpu.dot_dimension_numbers<[1], [0], [0], [1], [0, 0, 1, 1], [], []>} : vector<16x32xbf16>, vector<32x128xbf16>, vector<16x128xf32> -> vector<16x128xf32>
    %c0_47 = arith.constant 0 : index
    %c0_48 = arith.constant 0 : index
    %136 = vector.load %arg10[%c0_47, %c0_48] : memref<1x128xf32, #tpu.memory_space<vmem>>, vector<1x128xf32>
    %137 = vector.broadcast %136 : vector<1x128xf32> to vector<16x128xf32>
    %138 = arith.addf %135, %137 : vector<16x128xf32>
    %139 = tpu.iota {dimensions = array<i32: 1>} : vector<16x128xi32>
    %c0_i32_49 = arith.constant 0 : i32
    %140 = vector.broadcast %c0_i32_49 : i32 to vector<16x128xi32>
    %141 = arith.cmpi eq, %139, %140 : vector<16x128xi32>
    %142 = vector.shape_cast %93 : vector<16x1xf32> to vector<16x1xf32>
    %143 = vector.broadcast %142 : vector<16x1xf32> to vector<16x128xf32>
    %144 = arith.select %141, %143, %138 : vector<16x128xi1>, vector<16x128xf32>
    %c1_i32_50 = arith.constant 1 : i32
    %145 = vector.broadcast %c1_i32_50 : i32 to vector<16x128xi32>
    %146 = arith.cmpi eq, %139, %145 : vector<16x128xi32>
    %147 = vector.shape_cast %94 : vector<16x1xf32> to vector<16x1xf32>
    %148 = vector.broadcast %147 : vector<16x1xf32> to vector<16x128xf32>
    %149 = arith.select %146, %148, %144 : vector<16x128xi1>, vector<16x128xf32>
    %c2_i32_51 = arith.constant 2 : i32
    %150 = vector.broadcast %c2_i32_51 : i32 to vector<16x128xi32>
    %151 = arith.cmpi eq, %139, %150 : vector<16x128xi32>
    %152 = vector.shape_cast %95 : vector<16x1xf32> to vector<16x1xf32>
    %153 = vector.broadcast %152 : vector<16x1xf32> to vector<16x128xf32>
    %154 = arith.select %151, %153, %149 : vector<16x128xi1>, vector<16x128xf32>
    %c3_i32 = arith.constant 3 : i32
    %155 = vector.broadcast %c3_i32 : i32 to vector<16x128xi32>
    %156 = arith.cmpi eq, %139, %155 : vector<16x128xi32>
    %157 = vector.shape_cast %96 : vector<16x1xf32> to vector<16x1xf32>
    %158 = vector.broadcast %157 : vector<16x1xf32> to vector<16x128xf32>
    %159 = arith.select %156, %158, %154 : vector<16x128xi1>, vector<16x128xf32>
    %c4_i32 = arith.constant 4 : i32
    %160 = vector.broadcast %c4_i32 : i32 to vector<16x128xi32>
    %161 = arith.cmpi eq, %139, %160 : vector<16x128xi32>
    %162 = vector.shape_cast %97 : vector<16x1xf32> to vector<16x1xf32>
    %163 = vector.broadcast %162 : vector<16x1xf32> to vector<16x128xf32>
    %164 = arith.select %161, %163, %159 : vector<16x128xi1>, vector<16x128xf32>
    %c0_52 = arith.constant 0 : index
    %c0_53 = arith.constant 0 : index
    %165 = vector.load %arg11[%c0_52, %c0_53] : memref<16x128xf32, #tpu.memory_space<vmem>>, vector<16x128xf32>
    tpu.vector_store %arg11[%c0_52, %c0_53], %164 {strides = array<i32>} : memref<16x128xf32, #tpu.memory_space<vmem>>, vector<16x128xf32>,
    return
  }
  func.func @transform_0(%arg0: i32) -> (i32, i32) {
    %c0_i32 = arith.constant 0 : i32
    %c0_i32_0 = arith.constant 0 : i32
    return %arg0, %c0_i32 : i32, i32
  }
  func.func @transform_1(%arg0: i32) -> (i32, i32) {
    %c0_i32 = arith.constant 0 : i32
    %c0_i32_0 = arith.constant 0 : i32
    %c0_i32_1 = arith.constant 0 : i32
    return %c0_i32, %c0_i32_0 : i32, i32
  }
  func.func @transform_2(%arg0: i32) -> (i32, i32) {
    %c0_i32 = arith.constant 0 : i32
    %c0_i32_0 = arith.constant 0 : i32
    %c0_i32_1 = arith.constant 0 : i32
    return %c0_i32, %c0_i32_0 : i32, i32
  }
  func.func @transform_3(%arg0: i32) -> (i32, i32) {
    %c0_i32 = arith.constant 0 : i32
    %c0_i32_0 = arith.constant 0 : i32
    %c0_i32_1 = arith.constant 0 : i32
    return %c0_i32, %c0_i32_0 : i32, i32
  }
  func.func @transform_4(%arg0: i32) -> (i32, i32) {
    %c0_i32 = arith.constant 0 : i32
    %c0_i32_0 = arith.constant 0 : i32
    %c0_i32_1 = arith.constant 0 : i32
    return %c0_i32, %c0_i32_0 : i32, i32
  }
  func.func @transform_5(%arg0: i32) -> (i32, i32) {
    %c0_i32 = arith.constant 0 : i32
    %c0_i32_0 = arith.constant 0 : i32
    %c0_i32_1 = arith.constant 0 : i32
    return %c0_i32, %c0_i32_0 : i32, i32
  }
  func.func @transform_6(%arg0: i32) -> (i32, i32) {
    %c0_i32 = arith.constant 0 : i32
    %c0_i32_0 = arith.constant 0 : i32
    %c0_i32_1 = arith.constant 0 : i32
    return %c0_i32, %c0_i32_0 : i32, i32
  }
  func.func @transform_7(%arg0: i32) -> (i32, i32) {
    %c0_i32 = arith.constant 0 : i32
    %c0_i32_0 = arith.constant 0 : i32
    %c0_i32_1 = arith.constant 0 : i32
    return %c0_i32, %c0_i32_0 : i32, i32
  }
  func.func @transform_8(%arg0: i32) -> (i32, i32) {
    %c0_i32 = arith.constant 0 : i32
    %c0_i32_0 = arith.constant 0 : i32
    %c0_i32_1 = arith.constant 0 : i32
    return %c0_i32, %c0_i32_0 : i32, i32
  }
  func.func @transform_9(%arg0: i32) -> (i32, i32) {
    %c0_i32 = arith.constant 0 : i32
    %c0_i32_0 = arith.constant 0 : i32
    %c0_i32_1 = arith.constant 0 : i32
    return %c0_i32, %c0_i32_0 : i32, i32
  }
  func.func @transform_10(%arg0: i32) -> (i32, i32) {
    %c0_i32 = arith.constant 0 : i32
    %c0_i32_0 = arith.constant 0 : i32
    return %arg0, %c0_i32 : i32, i32
  }
}

</mosaic_0001>

<llo_original>
// kernel: tpu_custom_call.1
$region0: #{tpu_custom_call.1}
  #allocation0 [shape = 'u32[]', space=smem, size = 0x4, offset = 0x4, fixed_abs, tag = 'smem constant byte address 0x4 - core index']
  #allocation1 [shape = 'u32[144,128]{1,0:T(1,128)}', space=vmem, size = 0x12000, scoped, tag = 'internal scratch']
  %s0 = inlined_call_operand.vmem [shape: bf16[16,64], index: 0, kind: input, shape index: {}]
  %s1 = inlined_call_operand.vmem [shape: f32[16,128], index: 1, kind: input, shape index: {}]
  %s2 = inlined_call_operand.vmem [shape: bf16[64,128], index: 2, kind: input, shape index: {}]
  %s3 = inlined_call_operand.vmem [shape: f32[1,128], index: 3, kind: input, shape index: {}]
  %s4 = inlined_call_operand.hbm [shape: bf16[128,384], index: 4, kind: input, shape index: {}]
  %s5 = inlined_call_operand.vmem [shape: f32[1,128], index: 5, kind: input, shape index: {}]
  %s6 = inlined_call_operand.vmem [shape: bf16[128,32], index: 6, kind: input, shape index: {}]
  %s7 = inlined_call_operand.vmem [shape: f32[1,32], index: 7, kind: input, shape index: {}]
  %s8 = inlined_call_operand.vmem [shape: bf16[32,128], index: 8, kind: input, shape index: {}]
  %s9 = inlined_call_operand.vmem [shape: f32[1,128], index: 9, kind: input, shape index: {}]
  %s10 = inlined_call_operand.hbm [shape: f32[16,128], index: 10, kind: output, shape index: {}]
  %s11 = sld [smem:[#allocation0]]
  $region54: #{tpu_custom_call.1} parent=0
    _
  %s13 = ssub.s32 1, %s11
  %s14 = scalar_select 0, %s13, %s11
  $region1: #{tpu_custom_call.1} parent=0
    #allocation2 [shape = 'u8[98304]{0}', space=vmem, size = 0x18000, scoped, tag = 'input window, operand 4, single buffered']
    #allocation3 [shape = 's32[1]{0}', space=sflag, size = 0x4, scoped, tag = 'scoped memory for tpu_custom_call.1']
    #allocation4 [shape = 's32[1]{0}', space=sflag, size = 0x4, scoped, tag = 'scoped memory for tpu_custom_call.1']
    #allocation5 [shape = 'u8[8192]{0}', space=vmem, size = 0x2000, scoped, tag = 'output window, operand 0, single buffered']
    %15 = vsyncpa [#allocation3], 0
    %16 = vsyncpa [#allocation4], 0
    // Predicated region
    $region2: #{tpu_custom_call.1} parent=1 // pred_check
      _
    $region3: #{tpu_custom_call.1} parent=1 // pred_check_branch
      %18 = sbr.rel (0) target = $region5
    $region4: #{tpu_custom_call.1} parent=1 // pred_region
      _
    $region5: #{tpu_custom_call.1} parent=1 // pred_fallthru
      _
    // Predicated region
    $region6: #{tpu_custom_call.1} parent=1 // pred_check
      _
    $region7: #{tpu_custom_call.1} parent=1 // pred_check_branch
      %20 = sbr.rel (0) target = $region9
    $region8: #{tpu_custom_call.1} parent=1 // pred_region
      _
    $region9: #{tpu_custom_call.1} parent=1 // pred_fallthru
      _
    // Predicated region
    $region10: #{tpu_custom_call.1} parent=1 // pred_check
      _
    $region11: #{tpu_custom_call.1} parent=1 // pred_check_branch
      %22 = sbr.rel (0) target = $region13
    $region12: #{tpu_custom_call.1} parent=1 // pred_region
      _
    $region13: #{tpu_custom_call.1} parent=1 // pred_fallthru
      _
    // Predicated region
    $region14: #{tpu_custom_call.1} parent=1 // pred_check
      _
    $region15: #{tpu_custom_call.1} parent=1 // pred_check_branch
      %24 = sbr.rel (0) target = $region17
    $region16: #{tpu_custom_call.1} parent=1 // pred_region
      _
    $region17: #{tpu_custom_call.1} parent=1 // pred_fallthru
      _
    // Predicated region
    $region18: #{tpu_custom_call.1} parent=1 // pred_check
      _
    $region19: #{tpu_custom_call.1} parent=1 // pred_check_branch
      %26 = sbr.rel (0) target = $region21
    $region20: #{tpu_custom_call.1} parent=1 // pred_region
      %s28 = ssub.s32 3072, 3072
      %29 = vsyncadd [#allocation3], %s28
      %s30 = sshll.u32 [#allocation2], 4
      %s31 = int_to_ptr.vmem [resolvable:$true] %s30
      %36 = dma.hbm_to_vmem [thread:$0]  %s4, 3072, %s31, [#allocation3], 192, 192, 12
    $region21: #{tpu_custom_call.1} parent=1 // pred_fallthru
      _
    // Predicated region
    $region22: #{tpu_custom_call.1} parent=1 // pred_check
      _
    $region23: #{tpu_custom_call.1} parent=1 // pred_check_branch
      %38 = sbr.rel (0) target = $region25
    $region24: #{tpu_custom_call.1} parent=1 // pred_region
      _
    $region25: #{tpu_custom_call.1} parent=1 // pred_fallthru
      _
    // Predicated region
    $region26: #{tpu_custom_call.1} parent=1 // pred_check
      _
    $region27: #{tpu_custom_call.1} parent=1 // pred_check_branch
      %40 = sbr.rel (0) target = $region29
    $region28: #{tpu_custom_call.1} parent=1 // pred_region
      _
    $region29: #{tpu_custom_call.1} parent=1 // pred_fallthru
      _
    // Predicated region
    $region30: #{tpu_custom_call.1} parent=1 // pred_check
      _
    $region31: #{tpu_custom_call.1} parent=1 // pred_check_branch
      %42 = sbr.rel (0) target = $region33
    $region32: #{tpu_custom_call.1} parent=1 // pred_region
      _
    $region33: #{tpu_custom_call.1} parent=1 // pred_fallthru
      _
    // Predicated region
    $region34: #{tpu_custom_call.1} parent=1 // pred_check
      _
    $region35: #{tpu_custom_call.1} parent=1 // pred_check_branch
      %44 = sbr.rel (0) target = $region37
    $region36: #{tpu_custom_call.1} parent=1 // pred_region
      _
    $region37: #{tpu_custom_call.1} parent=1 // pred_fallthru
      _
    // Predicated region
    $region38: #{tpu_custom_call.1} parent=1 // pred_check
      _
    $region39: #{tpu_custom_call.1} parent=1 // pred_check_branch
      %46 = sbr.rel (0) target = $region41
    $region40: #{tpu_custom_call.1} parent=1 // pred_region
      _
    $region41: #{tpu_custom_call.1} parent=1 // pred_fallthru
      _
    // Predicated region
    $region42: #{tpu_custom_call.1} parent=1 // pred_check
      _
    $region43: #{tpu_custom_call.1} parent=1 // pred_check_branch
      %48 = sbr.rel (0) target = $region45
    $region44: #{tpu_custom_call.1} parent=1 // pred_region
      %49 = dma.done [#allocation3], 3072
    $region45: #{tpu_custom_call.1} parent=1 // pred_fallthru
      _
    %v51 = vld [vmem:[%s0] sm:$0xf]
    %v52 = vld [vmem:[%s0 + $0x4] sm:$0xf]
    %v53 = vld [vmem:[%s2] sm:$0xf]
    %v54 = vld [vmem:[%s2 + $0x4] sm:$0xf]
    %v55 = vld [vmem:[%s2 + $0x8] sm:$0xf]
    %v56 = vld [vmem:[%s2 + $0xc] sm:$0xf]
    %v57 = vld [vmem:[%s2 + $0x10] sm:$0xf]
    %v58 = vld [vmem:[%s2 + $0x14] sm:$0xf]
    %v59 = vld [vmem:[%s2 + $0x18] sm:$0xf]
    %v60 = vld [vmem:[%s2 + $0x1c] sm:$0xf]
    %v61 = vld [vmem:[%s3] sm:$0x1]
    %v63 = vlaneseq
    %v64 = vshrl.u32 %v63, 7
    %v65 = vsub.s32 0, %v64
    %v66 = vrot.slane %v61, %v65
    %v70 = vunpack.c.l.b16 %v51
    %v71 = vunpack.c.l.b16 %v52
    %v72 = vpack.c.b16 %v71, %v70
    %v81 = vunpack.c.l.b16 %v53
    %v82 = vunpack.c.l.b16 %v54
    %v83 = vunpack.c.l.b16 %v55
    %v84 = vunpack.c.l.b16 %v56
    %v85 = vunpack.c.l.b16 %v57
    %v86 = vunpack.c.l.b16 %v58
    %v87 = vunpack.c.l.b16 %v59
    %v88 = vunpack.c.l.b16 %v60
    %v89 = vpack.c.b16 %v82, %v81
    %v90 = vpack.c.b16 %v84, %v83
    %v91 = vpack.c.b16 %v86, %v85
    %v92 = vpack.c.b16 %v88, %v87
    %vm97 = vcmask 523264
    %v99 = vsel %vm97, %v72, 0
    %101 = vmatprep.subr.bf16.mxu0 0
    %102 = vmatpush1.bf16.msra.mxu0 %v89
    %103 = vmatprep.subr.bf16.mxu0 0
    %104 = vmatpush1.bf16.msra.mxu0 %v90
    %105 = vmatprep.subr.bf16.mxu0 0
    %106 = vmatpush1.bf16.msra.mxu0 %v91
    %107 = vmatprep.subr.bf16.mxu0 0
    %108 = vmatpush1.bf16.msra.mxu0 %v92
    %109 = vmatprep.subr.bf16.mxu0 0
    %110 = vmatpush1.bf16.msra.mxu0 0
    %111 = vmatprep.subr.bf16.mxu0 0
    %112 = vmatpush1.bf16.msra.mxu0 0
    %113 = vmatprep.subr.bf16.mxu0 0
    %114 = vmatpush1.bf16.msra.mxu0 0
    %115 = vmatprep.subr.bf16.mxu0 0
    %116 = vmatpush1.bf16.msra.mxu0 0
    %117 = vmatprep.subr.bf16.mxu0 0
    %118 = vmatpush1.bf16.msra.mxu0 0
    %119 = vmatprep.subr.bf16.mxu0 0
    %120 = vmatpush1.bf16.msra.mxu0 0
    %121 = vmatprep.subr.bf16.mxu0 0
    %122 = vmatpush1.bf16.msra.mxu0 0
    %123 = vmatprep.subr.bf16.mxu0 0
    %124 = vmatpush1.bf16.msra.mxu0 0
    %125 = vmatprep.subr.bf16.mxu0 0
    %126 = vmatpush1.bf16.msra.mxu0 0
    %127 = vmatprep.subr.bf16.mxu0 0
    %128 = vmatpush1.bf16.msra.mxu0 0
    %129 = vmatprep.subr.bf16.mxu0 0
    %130 = vmatpush1.bf16.msra.mxu0 0
    %131 = vmatprep.subr.bf16.mxu0 0
    %132 = vmatpush1.bf16.msra.mxu0 0
    %133 = vmatprep.mubr.bf16.mxu0 0
    %134 = vmatmul.mubr.bf16.gmra.mrb[0].mxu0 %v99
    %v135 = vpop.f32.mrb[0].mxu0
    %v136 = vadd.f32 %v66, %v135
    %v137 = vpop.f32.mrb[0].mxu0
    %v138 = vpop.f32.mrb[0].mxu0
    %v139 = vadd.f32 %v66, %v138
    %v140 = vpop.f32.mrb[0].mxu0
    %141 = vdwg.mxu0
    %v142 = vmax.f32 %v136, 0.0
    %v143 = vmax.f32 %v139, 0.0
    %v144 = vld [vmem:[%s1] sm:$0xff]
    %v145 = vld [vmem:[%s1 + $0x8] sm:$0xff]
    %v146 = vadd.f32 %v142, %v144
    %v147 = vadd.f32 %v143, %v145
    %v148 = vpack.c.bf16 %v147, %v146
    %v149 = vld [vmem:[#allocation2] sm:$0xff]
    %v150 = vld [vmem:[#allocation2 + $0x8] sm:$0xf]
    %v151 = vld [vmem:[#allocation2 + $0xc] sm:$0xff]
    %v152 = vld [vmem:[#allocation2 + $0x14] sm:$0xf]
    %v153 = vld [vmem:[#allocation2 + $0x18] sm:$0xff]
    %v154 = vld [vmem:[#allocation2 + $0x20] sm:$0xf]
    %v155 = vld [vmem:[#allocation2 + $0x24] sm:$0xff]
    %v156 = vld [vmem:[#allocation2 + $0x2c] sm:$0xf]
    %v157 = vld [vmem:[#allocation2 + $0x30] sm:$0xff]
    %v158 = vld [vmem:[#allocation2 + $0x38] sm:$0xf]
    %v159 = vld [vmem:[#allocation2 + $0x3c] sm:$0xff]
    %v160 = vld [vmem:[#allocation2 + $0x44] sm:$0xf]
    %v161 = vld [vmem:[#allocation2 + $0x48] sm:$0xff]
    %v162 = vld [vmem:[#allocation2 + $0x50] sm:$0xf]
    %v163 = vld [vmem:[#allocation2 + $0x54] sm:$0xff]
    %v164 = vld [vmem:[#allocation2 + $0x5c] sm:$0xf]
    %v165 = vld [vmem:[#allocation2 + $0x60] sm:$0xff]
    %v166 = vld [vmem:[#allocation2 + $0x68] sm:$0xf]
    %v167 = vld [vmem:[#allocation2 + $0x6c] sm:$0xff]
    %v168 = vld [vmem:[#allocation2 + $0x74] sm:$0xf]
    %v169 = vld [vmem:[#allocation2 + $0x78] sm:$0xff]
    %v170 = vld [vmem:[#allocation2 + $0x80] sm:$0xf]
    %v171 = vld [vmem:[#allocation2 + $0x84] sm:$0xff]
    %v172 = vld [vmem:[#allocation2 + $0x8c] sm:$0xf]
    %v173 = vld [vmem:[#allocation2 + $0x90] sm:$0xff]
    %v174 = vld [vmem:[#allocation2 + $0x98] sm:$0xf]
    %v175 = vld [vmem:[#allocation2 + $0x9c] sm:$0xff]
    %v176 = vld [vmem:[#allocation2 + $0xa4] sm:$0xf]
    %v177 = vld [vmem:[#allocation2 + $0xa8] sm:$0xff]
    %v178 = vld [vmem:[#allocation2 + $0xb0] sm:$0xf]
    %v179 = vld [vmem:[#allocation2 + $0xb4] sm:$0xff]
    %v180 = vld [vmem:[#allocation2 + $0xbc] sm:$0xf]
    %v213 = vunpack.c.l.b16 %v149
    %v214 = vunpack.c.h.b16 %v149
    %v215 = vunpack.c.l.b16 %v150
    %v216 = vunpack.c.l.b16 %v151
    %v217 = vunpack.c.h.b16 %v151
    %v218 = vunpack.c.l.b16 %v152
    %v219 = vunpack.c.l.b16 %v153
    %v220 = vunpack.c.h.b16 %v153
    %v221 = vunpack.c.l.b16 %v154
    %v222 = vunpack.c.l.b16 %v155
    %v223 = vunpack.c.h.b16 %v155
    %v224 = vunpack.c.l.b16 %v156
    %v225 = vunpack.c.l.b16 %v157
    %v226 = vunpack.c.h.b16 %v157
    %v227 = vunpack.c.l.b16 %v158
    %v228 = vunpack.c.l.b16 %v159
    %v229 = vunpack.c.h.b16 %v159
    %v230 = vunpack.c.l.b16 %v160
    %v231 = vunpack.c.l.b16 %v161
    %v232 = vunpack.c.h.b16 %v161
    %v233 = vunpack.c.l.b16 %v162
    %v234 = vunpack.c.l.b16 %v163
    %v235 = vunpack.c.h.b16 %v163
    %v236 = vunpack.c.l.b16 %v164
    %v237 = vunpack.c.l.b16 %v165
    %v238 = vunpack.c.h.b16 %v165
    %v239 = vunpack.c.l.b16 %v166
    %v240 = vunpack.c.l.b16 %v167
    %v241 = vunpack.c.h.b16 %v167
    %v242 = vunpack.c.l.b16 %v168
    %v243 = vunpack.c.l.b16 %v169
    %v244 = vunpack.c.h.b16 %v169
    %v245 = vunpack.c.l.b16 %v170
    %v246 = vunpack.c.l.b16 %v171
    %v247 = vunpack.c.h.b16 %v171
    %v248 = vunpack.c.l.b16 %v172
    %v249 = vunpack.c.l.b16 %v173
    %v250 = vunpack.c.h.b16 %v173
    %v251 = vunpack.c.l.b16 %v174
    %v252 = vunpack.c.l.b16 %v175
    %v253 = vunpack.c.h.b16 %v175
    %v254 = vunpack.c.l.b16 %v176
    %v255 = vunpack.c.l.b16 %v177
    %v256 = vunpack.c.h.b16 %v177
    %v257 = vunpack.c.l.b16 %v178
    %v258 = vunpack.c.l.b16 %v179
    %v259 = vunpack.c.h.b16 %v179
    %v260 = vunpack.c.l.b16 %v180
    %v261 = vpack.c.b16 %v216, %v213
    %v262 = vpack.c.b16 %v217, %v214
    %v263 = vpack.c.b16 %v218, %v215
    %v264 = vpack.c.b16 %v222, %v219
    %v265 = vpack.c.b16 %v223, %v220
    %v266 = vpack.c.b16 %v224, %v221
    %v267 = vpack.c.b16 %v228, %v225
    %v268 = vpack.c.b16 %v229, %v226
    %v269 = vpack.c.b16 %v230, %v227
    %v270 = vpack.c.b16 %v234, %v231
    %v271 = vpack.c.b16 %v235, %v232
    %v272 = vpack.c.b16 %v236, %v233
    %v273 = vpack.c.b16 %v240, %v237
    %v274 = vpack.c.b16 %v241, %v238
    %v275 = vpack.c.b16 %v242, %v239
    %v276 = vpack.c.b16 %v246, %v243
    %v277 = vpack.c.b16 %v247, %v244
    %v278 = vpack.c.b16 %v248, %v245
    %v279 = vpack.c.b16 %v252, %v249
    %v280 = vpack.c.b16 %v253, %v250
    %v281 = vpack.c.b16 %v254, %v251
    %v282 = vpack.c.b16 %v258, %v255
    %v283 = vpack.c.b16 %v259, %v256
    %v284 = vpack.c.b16 %v260, %v257
    %309 = vmatprep.subr.bf16.mxu0 %v262
    %310 = vmatpush1.bf16.msra.mxu0 %v261
    %311 = vmatprep.subr.bf16.mxu0 %v265
    %312 = vmatpush1.bf16.msra.mxu0 %v264
    %313 = vmatprep.subr.bf16.mxu0 %v268
    %314 = vmatpush1.bf16.msra.mxu0 %v267
    %315 = vmatprep.subr.bf16.mxu0 %v271
    %316 = vmatpush1.bf16.msra.mxu0 %v270
    %317 = vmatprep.subr.bf16.mxu0 %v274
    %318 = vmatpush1.bf16.msra.mxu0 %v273
    %319 = vmatprep.subr.bf16.mxu0 %v277
    %320 = vmatpush1.bf16.msra.mxu0 %v276
    %321 = vmatprep.subr.bf16.mxu0 %v280
    %322 = vmatpush1.bf16.msra.mxu0 %v279
    %323 = vmatprep.subr.bf16.mxu0 %v283
    %324 = vmatpush1.bf16.msra.mxu0 %v282
    %325 = vmatprep.subr.bf16.mxu0 0
    %326 = vmatpush1.bf16.msra.mxu0 0
    %327 = vmatprep.subr.bf16.mxu0 0
    %328 = vmatpush1.bf16.msra.mxu0 0
    %329 = vmatprep.subr.bf16.mxu0 0
    %330 = vmatpush1.bf16.msra.mxu0 0
    %331 = vmatprep.subr.bf16.mxu0 0
    %332 = vmatpush1.bf16.msra.mxu0 0
    %333 = vmatprep.subr.bf16.mxu0 0
    %334 = vmatpush1.bf16.msra.mxu0 0
    %335 = vmatprep.subr.bf16.mxu0 0
    %336 = vmatpush1.bf16.msra.mxu0 0
    %337 = vmatprep.subr.bf16.mxu0 0
    %338 = vmatpush1.bf16.msra.mxu0 0
    %339 = vmatprep.subr.bf16.mxu0 0
    %340 = vmatpush1.bf16.msra.mxu0 0
    %341 = vmatprep.mubr.bf16.mxu0 0
    %342 = vmatmul.mubr.bf16.gmra.mrb[0].mxu0 %v148
    %v343 = vpop.f32.mrb[0].mxu0
    %v344 = vadd.f32 0.0, %v343
    %v345 = vpop.f32.mrb[0].mxu0
    %v346 = vadd.f32 0.0, %v345
    %v347 = vpop.f32.mrb[0].mxu0
    %v348 = vadd.f32 0.0, %v347
    %v349 = vpop.f32.mrb[0].mxu0
    %v350 = vadd.f32 0.0, %v349
    %351 = vdwg.mxu0
    %352 = vmatprep.subr.bf16.mxu0 0
    %353 = vmatpush1.bf16.msra.mxu0 %v263
    %354 = vmatprep.subr.bf16.mxu0 0
    %355 = vmatpush1.bf16.msra.mxu0 %v266
    %356 = vmatprep.subr.bf16.mxu0 0
    %357 = vmatpush1.bf16.msra.mxu0 %v269
    %358 = vmatprep.subr.bf16.mxu0 0
    %359 = vmatpush1.bf16.msra.mxu0 %v272
    %360 = vmatprep.subr.bf16.mxu0 0
    %361 = vmatpush1.bf16.msra.mxu0 %v275
    %362 = vmatprep.subr.bf16.mxu0 0
    %363 = vmatpush1.bf16.msra.mxu0 %v278
    %364 = vmatprep.subr.bf16.mxu0 0
    %365 = vmatpush1.bf16.msra.mxu0 %v281
    %366 = vmatprep.subr.bf16.mxu0 0
    %367 = vmatpush1.bf16.msra.mxu0 %v284
    %368 = vmatprep.subr.bf16.mxu0 0
    %369 = vmatpush1.bf16.msra.mxu0 0
    %370 = vmatprep.subr.bf16.mxu0 0
    %371 = vmatpush1.bf16.msra.mxu0 0
    %372 = vmatprep.subr.bf16.mxu0 0
    %373 = vmatpush1.bf16.msra.mxu0 0
    %374 = vmatprep.subr.bf16.mxu0 0
    %375 = vmatpush1.bf16.msra.mxu0 0
    %376 = vmatprep.subr.bf16.mxu0 0
    %377 = vmatpush1.bf16.msra.mxu0 0
    %378 = vmatprep.subr.bf16.mxu0 0
    %379 = vmatpush1.bf16.msra.mxu0 0
    %380 = vmatprep.subr.bf16.mxu0 0
    %381 = vmatpush1.bf16.msra.mxu0 0
    %382 = vmatprep.subr.bf16.mxu0 0
    %383 = vmatpush1.bf16.msra.mxu0 0
    %384 = vmatprep.mubr.bf16.mxu0 0
    %385 = vmatmul.mubr.bf16.gmra.mrb[0].mxu0 %v148
    %v386 = vpop.f32.mrb[0].mxu0
    %v387 = vadd.f32 0.0, %v386
    %v388 = vpop.f32.mrb[0].mxu0
    %v389 = vpop.f32.mrb[0].mxu0
    %v390 = vadd.f32 0.0, %v389
    %v391 = vpop.f32.mrb[0].mxu0
    %392 = vdwg.mxu0
    %v393 = vmul.f32 %v344, 0.088388346
    %v394 = vmul.f32 %v348, 0.088388346
    %v395 = vlaneseq
    %v396 = vshrl.u32 %v395, 7
    %v397 = vadd.s32 %v396, 8
    %vm398 = vcmp.lt.s32.totalorder %v396, 0
    %v399 = vsub.s32 0, %v396
    %v400 = vsel %vm398, %v399, %v396
    %v401 = vshrl.u32 %v400, 3
    %v402 = vand.u32 %v400, 7
    %v403 = vsub.s32 0, %v402
    %v404 = vsel %vm398, %v403, %v402
    %vm405 = vcmp.lt.s32.totalorder %v397, 0
    %v406 = vsub.s32 0, %v397
    %v407 = vsel %vm405, %v406, %v397
    %v408 = vshrl.u32 %v407, 3
    %v409 = vand.u32 %v407, 7
    %v410 = vsub.s32 0, %v409
    %v411 = vsel %vm405, %v410, %v409
    %vm412 = vcmp.ne.s32.totalorder %v404, 0
    %vm413 = vcmp.ne.s32.totalorder %v411, 0
    %vm414 = vcmp.lt.s32.totalorder %v404, 0
    %vm415 = vcmp.lt.s32.totalorder %v411, 0
    %vm416 = vmand %vm414, %vm412
    %vm417 = vmand %vm415, %vm413
    %v418 = vadd.s32 %v404, 8
    %v419 = vadd.s32 %v411, 8
    %v420 = vsel %vm416, %v418, %v404
    %v421 = vsel %vm417, %v419, %v411
    %v422 = vrot.slane %v346, 2
    %v423 = vrot.slane %v350, 2
    %vm424 = vcmp.lt.s32.totalorder %v396, 6
    %v425 = vsel %vm424, %v422, %v423
    %v426 = vsel %vm424, %v423, %v422
    %v427 = vrot.slane %v387, 2
    %v428 = vrot.slane %v390, 2
    %v429 = vsel %vm424, %v427, %v428
    %v430 = vsel %vm424, %v428, %v427
    %vm431 = vcmp.lt.s32.totalorder %v420, 6
    %vm432 = vcmp.lt.s32.totalorder %v421, 6
    %v433 = vmul.f32 %v393, %v425
    %v434 = vmul.f32 %v394, %v426
    %435 = vadd.xlane.f32.xlu0 %v433
    %v436 = vpop.xlane.xlu0 %435
    %437 = vadd.xlane.f32.xlu0 %v434
    %v438 = vpop.xlane.xlu0 %437
    %v439 = vsel %vm431, %v436, 0.0
    %v440 = vsel %vm432, %v438, 0.0
    %v441 = vrot.slane %v346, 1
    %v442 = vrot.slane %v350, 1
    %vm443 = vcmp.lt.s32.totalorder %v396, 7
    %v444 = vsel %vm443, %v441, %v442
    %v445 = vsel %vm443, %v442, %v441
    %v446 = vrot.slane %v387, 1
    %v447 = vrot.slane %v390, 1
    %v448 = vsel %vm443, %v446, %v447
    %v449 = vsel %vm443, %v447, %v446
    %vm450 = vcmp.lt.s32.totalorder %v420, 7
    %vm451 = vcmp.lt.s32.totalorder %v421, 7
    %v452 = vmul.f32 %v393, %v444
    %v453 = vmul.f32 %v394, %v445
    %454 = vadd.xlane.f32.xlu0 %v452
    %v455 = vpop.xlane.xlu0 %454
    %456 = vadd.xlane.f32.xlu0 %v453
    %v457 = vpop.xlane.xlu0 %456
    %v458 = vsel %vm450, %v455, 0.0
    %v459 = vsel %vm451, %v457, 0.0
    %v460 = vmul.f32 %v393, %v346
    %v461 = vmul.f32 %v394, %v350
    %462 = vadd.xlane.f32.xlu0 %v460
    %v463 = vpop.xlane.xlu0 %462
    %464 = vadd.xlane.f32.xlu0 %v461
    %v465 = vpop.xlane.xlu0 %464
    %v466 = vrot.slane %v346, 7
    %v467 = vrot.slane %v350, 7
    %vm468 = vcmp.lt.s32.totalorder %v396, 1
    %v469 = vsel %vm468, %v466, %v467
    %v470 = vsel %vm468, %v467, %v466
    %v471 = vrot.slane %v387, 7
    %v472 = vrot.slane %v390, 7
    %v473 = vsel %vm468, %v471, %v472
    %v474 = vsel %vm468, %v472, %v471
    %vm475 = vcmp.ge.s32.totalorder %v420, 1
    %vm476 = vcmp.ge.s32.totalorder %v421, 1
    %v477 = vmul.f32 %v393, %v470
    %v478 = vmul.f32 %v394, %v469
    %479 = vadd.xlane.f32.xlu0 %v477
    %v480 = vpop.xlane.xlu0 %479
    %481 = vadd.xlane.f32.xlu0 %v478
    %v482 = vpop.xlane.xlu0 %481
    %v483 = vsel %vm475, %v480, 0.0
    %v484 = vsel %vm476, %v482, 0.0
    %v485 = vrot.slane %v346, 6
    %v486 = vrot.slane %v350, 6
    %vm487 = vcmp.lt.s32.totalorder %v396, 2
    %v488 = vsel %vm487, %v485, %v486
    %v489 = vsel %vm487, %v486, %v485
    %v490 = vrot.slane %v387, 6
    %v491 = vrot.slane %v390, 6
    %v492 = vsel %vm487, %v490, %v491
    %v493 = vsel %vm487, %v491, %v490
    %vm494 = vcmp.ge.s32.totalorder %v420, 2
    %vm495 = vcmp.ge.s32.totalorder %v421, 2
    %v496 = vmul.f32 %v393, %v489
    %v497 = vmul.f32 %v394, %v488
    %498 = vadd.xlane.f32.xlu0 %v496
    %v499 = vpop.xlane.xlu0 %498
    %500 = vadd.xlane.f32.xlu0 %v497
    %v501 = vpop.xlane.xlu0 %500
    %v502 = vsel %vm494, %v499, 0.0
    %v503 = vsel %vm495, %v501, 0.0
    %v504 = vmax.f32 %v439, %v458
    %v505 = vmax.f32 %v440, %v459
    %v506 = vmax.f32 %v504, %v463
    %v507 = vmax.f32 %v505, %v465
    %v508 = vmax.f32 %v506, %v483
    %v509 = vmax.f32 %v507, %v484
    %v510 = vmax.f32 %v508, %v502
    %v511 = vmax.f32 %v509, %v503
    %v512 = vsub.f32 %v439, %v510
    %v513 = vsub.f32 %v440, %v511
    %v514 = vmul.f32 %v512, 1.442695
    %v515 = vpow.pop %v514
    %v516 = vmul.f32 %v513, 1.442695
    %v517 = vpow.pop %v516
    %v518 = vsub.f32 %v458, %v510
    %v519 = vsub.f32 %v459, %v511
    %v520 = vmul.f32 %v518, 1.442695
    %v521 = vpow.pop %v520
    %v522 = vmul.f32 %v519, 1.442695
    %v523 = vpow.pop %v522
    %v524 = vsub.f32 %v463, %v510
    %v525 = vsub.f32 %v465, %v511
    %v526 = vmul.f32 %v524, 1.442695
    %v527 = vpow.pop %v526
    %v528 = vmul.f32 %v525, 1.442695
    %v529 = vpow.pop %v528
    %v530 = vsub.f32 %v483, %v510
    %v531 = vsub.f32 %v484, %v511
    %v532 = vmul.f32 %v530, 1.442695
    %v533 = vpow.pop %v532
    %v534 = vmul.f32 %v531, 1.442695
    %v535 = vpow.pop %v534
    %v536 = vsub.f32 %v502, %v510
    %v537 = vsub.f32 %v503, %v511
    %v538 = vmul.f32 %v536, 1.442695
    %v539 = vpow.pop %v538
    %v540 = vmul.f32 %v537, 1.442695
    %v541 = vpow.pop %v540
    %v542 = vadd.f32 %v515, %v521
    %v543 = vadd.f32 %v517, %v523
    %v544 = vadd.f32 %v542, %v527
    %v545 = vadd.f32 %v543, %v529
    %v546 = vadd.f32 %v544, %v533
    %v547 = vadd.f32 %v545, %v535
    %v548 = vadd.f32 %v546, %v539
    %v549 = vadd.f32 %v547, %v541
    %v550 = vrcp.pop %v548
    %v551 = vrcp.pop %v549
    %v552 = vmul.f32 %v515, %v550
    %v553 = vmul.f32 %v517, %v551
    %v554 = vmul.f32 %v521, %v550
    %v555 = vmul.f32 %v523, %v551
    %v556 = vmul.f32 %v527, %v550
    %v557 = vmul.f32 %v529, %v551
    %v558 = vmul.f32 %v533, %v550
    %v559 = vmul.f32 %v535, %v551
    %v560 = vmul.f32 %v539, %v550
    %v561 = vmul.f32 %v541, %v551
    %v562 = vsel %vm431, %v552, 0.0
    %v563 = vsel %vm432, %v553, 0.0
    %v564 = vmul.f32 %v562, %v429
    %v565 = vmul.f32 %v563, %v430
    %v566 = vadd.f32 %v564, 0.0
    %v567 = vadd.f32 %v565, 0.0
    %v568 = vsel %vm450, %v554, 0.0
    %v569 = vsel %vm451, %v555, 0.0
    %v570 = vmul.f32 %v568, %v448
    %v571 = vmul.f32 %v569, %v449
    %v572 = vadd.f32 %v566, %v570
    %v573 = vadd.f32 %v567, %v571
    %v574 = vmul.f32 %v556, %v387
    %v575 = vmul.f32 %v557, %v390
    %v576 = vadd.f32 %v572, %v574
    %v577 = vadd.f32 %v573, %v575
    %v578 = vsel %vm475, %v558, 0.0
    %v579 = vsel %vm476, %v559, 0.0
    %v580 = vmul.f32 %v578, %v474
    %v581 = vmul.f32 %v579, %v473
    %v582 = vadd.f32 %v576, %v580
    %v583 = vadd.f32 %v577, %v581
    %v584 = vsel %vm494, %v560, 0.0
    %v585 = vsel %vm495, %v561, 0.0
    %v586 = vmul.f32 %v584, %v493
    %v587 = vmul.f32 %v585, %v492
    %v588 = vadd.f32 %v582, %v586
    %v589 = vadd.f32 %v583, %v587
    %v590 = vld [vmem:[%s5] sm:$0x1]
    %v592 = vlaneseq
    %v593 = vshrl.u32 %v592, 7
    %v594 = vsub.s32 0, %v593
    %v595 = vrot.slane %v590, %v594
    %v597 = vadd.f32 %v588, %v595
    %v598 = vadd.f32 %v589, %v595
    %v599 = vpack.c.bf16 %v598, %v597
    %v600 = vld [vmem:[%s6] sm:$0xf]
    %v601 = vld [vmem:[%s6 + $0x4] sm:$0xf]
    %v602 = vld [vmem:[%s6 + $0x8] sm:$0xf]
    %v603 = vld [vmem:[%s6 + $0xc] sm:$0xf]
    %v604 = vld [vmem:[%s6 + $0x10] sm:$0xf]
    %v605 = vld [vmem:[%s6 + $0x14] sm:$0xf]
    %v606 = vld [vmem:[%s6 + $0x18] sm:$0xf]
    %v607 = vld [vmem:[%s6 + $0x1c] sm:$0xf]
    %v608 = vld [vmem:[%s6 + $0x20] sm:$0xf]
    %v609 = vld [vmem:[%s6 + $0x24] sm:$0xf]
    %v610 = vld [vmem:[%s6 + $0x28] sm:$0xf]
    %v611 = vld [vmem:[%s6 + $0x2c] sm:$0xf]
    %v612 = vld [vmem:[%s6 + $0x30] sm:$0xf]
    %v613 = vld [vmem:[%s6 + $0x34] sm:$0xf]
    %v614 = vld [vmem:[%s6 + $0x38] sm:$0xf]
    %v615 = vld [vmem:[%s6 + $0x3c] sm:$0xf]
    %v616 = vld [vmem:[%s7] sm:$0x1]
    %v618 = vlaneseq
    %v619 = vshrl.u32 %v618, 7
    %v620 = vsub.s32 0, %v619
    %v621 = vrot.slane %v616, %v620
    %v639 = vunpack.c.l.b16 %v600
    %v640 = vunpack.c.l.b16 %v601
    %v641 = vunpack.c.l.b16 %v602
    %v642 = vunpack.c.l.b16 %v603
    %v643 = vunpack.c.l.b16 %v604
    %v644 = vunpack.c.l.b16 %v605
    %v645 = vunpack.c.l.b16 %v606
    %v646 = vunpack.c.l.b16 %v607
    %v647 = vunpack.c.l.b16 %v608
    %v648 = vunpack.c.l.b16 %v609
    %v649 = vunpack.c.l.b16 %v610
    %v650 = vunpack.c.l.b16 %v611
    %v651 = vunpack.c.l.b16 %v612
    %v652 = vunpack.c.l.b16 %v613
    %v653 = vunpack.c.l.b16 %v614
    %v654 = vunpack.c.l.b16 %v615
    %v655 = vpack.c.b16 %v640, %v639
    %v656 = vpack.c.b16 %v642, %v641
    %v657 = vpack.c.b16 %v644, %v643
    %v658 = vpack.c.b16 %v646, %v645
    %v659 = vpack.c.b16 %v648, %v647
    %v660 = vpack.c.b16 %v650, %v649
    %v661 = vpack.c.b16 %v652, %v651
    %v662 = vpack.c.b16 %v654, %v653
    %671 = vmatprep.subr.bf16.mxu0 0
    %672 = vmatpush1.bf16.msra.mxu0 %v655
    %673 = vmatprep.subr.bf16.mxu0 0
    %674 = vmatpush1.bf16.msra.mxu0 %v656
    %675 = vmatprep.subr.bf16.mxu0 0
    %676 = vmatpush1.bf16.msra.mxu0 %v657
    %677 = vmatprep.subr.bf16.mxu0 0
    %678 = vmatpush1.bf16.msra.mxu0 %v658
    %679 = vmatprep.subr.bf16.mxu0 0
    %680 = vmatpush1.bf16.msra.mxu0 %v659
    %681 = vmatprep.subr.bf16.mxu0 0
    %682 = vmatpush1.bf16.msra.mxu0 %v660
    %683 = vmatprep.subr.bf16.mxu0 0
    %684 = vmatpush1.bf16.msra.mxu0 %v661
    %685 = vmatprep.subr.bf16.mxu0 0
    %686 = vmatpush1.bf16.msra.mxu0 %v662
    %687 = vmatprep.subr.bf16.mxu0 0
    %688 = vmatpush1.bf16.msra.mxu0 0
    %689 = vmatprep.subr.bf16.mxu0 0
    %690 = vmatpush1.bf16.msra.mxu0 0
    %691 = vmatprep.subr.bf16.mxu0 0
    %692 = vmatpush1.bf16.msra.mxu0 0
    %693 = vmatprep.subr.bf16.mxu0 0
    %694 = vmatpush1.bf16.msra.mxu0 0
    %695 = vmatprep.subr.bf16.mxu0 0
    %696 = vmatpush1.bf16.msra.mxu0 0
    %697 = vmatprep.subr.bf16.mxu0 0
    %698 = vmatpush1.bf16.msra.mxu0 0
    %699 = vmatprep.subr.bf16.mxu0 0
    %700 = vmatpush1.bf16.msra.mxu0 0
    %701 = vmatprep.subr.bf16.mxu0 0
    %702 = vmatpush1.bf16.msra.mxu0 0
    %703 = vmatprep.mubr.bf16.mxu0 0
    %704 = vmatmul.mubr.bf16.gmra.mrb[0].mxu0 %v599
    %v705 = vpop.f32.mrb[0].mxu0
    %v706 = vadd.f32 %v621, %v705
    %v707 = vpop.f32.mrb[0].mxu0
    %v708 = vpop.f32.mrb[0].mxu0
    %v709 = vadd.f32 %v621, %v708
    %v710 = vpop.f32.mrb[0].mxu0
    %711 = vdwg.mxu0
    %v712 = vmax.f32 %v706, 0.0
    %v713 = vmax.f32 %v709, 0.0
    %v714 = vpack.c.bf16 %v713, %v712
    %v715 = vld [vmem:[%s8] sm:$0xf]
    %v716 = vld [vmem:[%s8 + $0x4] sm:$0xf]
    %v717 = vld [vmem:[%s8 + $0x8] sm:$0xf]
    %v718 = vld [vmem:[%s8 + $0xc] sm:$0xf]
    %v719 = vld [vmem:[%s9] sm:$0x1]
    %v721 = vlaneseq
    %v722 = vshrl.u32 %v721, 7
    %v723 = vsub.s32 0, %v722
    %v724 = vrot.slane %v719, %v723
    %v730 = vunpack.c.l.b16 %v715
    %v731 = vunpack.c.l.b16 %v716
    %v732 = vunpack.c.l.b16 %v717
    %v733 = vunpack.c.l.b16 %v718
    %v734 = vpack.c.b16 %v731, %v730
    %v735 = vpack.c.b16 %v733, %v732
    %vm738 = vcmask 261120
    %v740 = vsel %vm738, %v714, 0
    %742 = vmatprep.subr.bf16.mxu0 0
    %743 = vmatpush1.bf16.msra.mxu0 %v734
    %744 = vmatprep.subr.bf16.mxu0 0
    %745 = vmatpush1.bf16.msra.mxu0 %v735
    %746 = vmatprep.subr.bf16.mxu0 0
    %747 = vmatpush1.bf16.msra.mxu0 0
    %748 = vmatprep.subr.bf16.mxu0 0
    %749 = vmatpush1.bf16.msra.mxu0 0
    %750 = vmatprep.subr.bf16.mxu0 0
    %751 = vmatpush1.bf16.msra.mxu0 0
    %752 = vmatprep.subr.bf16.mxu0 0
    %753 = vmatpush1.bf16.msra.mxu0 0
    %754 = vmatprep.subr.bf16.mxu0 0
    %755 = vmatpush1.bf16.msra.mxu0 0
    %756 = vmatprep.subr.bf16.mxu0 0
    %757 = vmatpush1.bf16.msra.mxu0 0
    %758 = vmatprep.subr.bf16.mxu0 0
    %759 = vmatpush1.bf16.msra.mxu0 0
    %760 = vmatprep.subr.bf16.mxu0 0
    %761 = vmatpush1.bf16.msra.mxu0 0
    %762 = vmatprep.subr.bf16.mxu0 0
    %763 = vmatpush1.bf16.msra.mxu0 0
    %764 = vmatprep.subr.bf16.mxu0 0
    %765 = vmatpush1.bf16.msra.mxu0 0
    %766 = vmatprep.subr.bf16.mxu0 0
    %767 = vmatpush1.bf16.msra.mxu0 0
    %768 = vmatprep.subr.bf16.mxu0 0
    %769 = vmatpush1.bf16.msra.mxu0 0
    %770 = vmatprep.subr.bf16.mxu0 0
    %771 = vmatpush1.bf16.msra.mxu0 0
    %772 = vmatprep.subr.bf16.mxu0 0
    %773 = vmatpush1.bf16.msra.mxu0 0
    %774 = vmatprep.mubr.bf16.mxu0 0
    %775 = vmatmul.mubr.bf16.gmra.mrb[0].mxu0 %v740
    %v776 = vpop.f32.mrb[0].mxu0
    %v777 = vadd.f32 %v724, %v776
    %v778 = vpop.f32.mrb[0].mxu0
    %v779 = vpop.f32.mrb[0].mxu0
    %v780 = vadd.f32 %v724, %v779
    %v781 = vpop.f32.mrb[0].mxu0
    %782 = vdwg.mxu0
    %v783 = vlaneseq
    %v784 = vand.u32 %v783, 127
    %vm785 = vcmp.eq.s32.totalorder %v784, 0
    %v786 = vsel %vm785, %v552, %v777
    %v787 = vsel %vm785, %v553, %v780
    %vm788 = vcmp.eq.s32.totalorder %v784, 1
    %v789 = vsel %vm788, %v554, %v786
    %v790 = vsel %vm788, %v555, %v787
    %vm791 = vcmp.eq.s32.totalorder %v784, 2
    %v792 = vsel %vm791, %v556, %v789
    %v793 = vsel %vm791, %v557, %v790
    %vm794 = vcmp.eq.s32.totalorder %v784, 3
    %v795 = vsel %vm794, %v558, %v792
    %v796 = vsel %vm794, %v559, %v793
    %vm797 = vcmp.eq.s32.totalorder %v784, 4
    %v798 = vsel %vm797, %v560, %v795
    %v799 = vsel %vm797, %v561, %v796
    %800 = vst [vmem:[#allocation5] sm:$0xff] %v798
    %801 = vst [vmem:[#allocation5 + $0x8] sm:$0xff] %v799
    // Predicated region
    $region46: #{tpu_custom_call.1} parent=1 // pred_check
      _
    $region47: #{tpu_custom_call.1} parent=1 // pred_check_branch
      %803 = sbr.rel (0) target = $region49
    $region48: #{tpu_custom_call.1} parent=1 // pred_region
      %s805 = ssub.s32 256, 256
      %806 = vsyncadd [#allocation4], %s805
      %s807 = sshll.u32 [#allocation5], 4
      %s808 = int_to_ptr.vmem [resolvable:$true] %s807
      %813 = dma.vmem_to_hbm [thread:$0]  %s808, 256, %s10, [#allocation4], 128, 128, 8
    $region49: #{tpu_custom_call.1} parent=1 // pred_fallthru
      _
    // Predicated region
    $region50: #{tpu_custom_call.1} parent=1 // pred_check
      _
    $region51: #{tpu_custom_call.1} parent=1 // pred_check_branch
      %815 = sbr.rel (0) target = $region53
    $region52: #{tpu_custom_call.1} parent=1 // pred_region
      %816 = dma.done [#allocation4], 256
    $region53: #{tpu_custom_call.1} parent=1 // pred_fallthru
      _
    %817 = vsyncpa [#allocation3], 1
    %818 = vsyncpa [#allocation4], 1

</llo_original>
